<compile_context>
chip_gen: v5e
topology: v5e:2x2
jax: 0.10.0
libtpu: 0.0.40
codegen_flags: <defaults>
</compile_context>

<pallas_src>
import jax
import jax.numpy as jnp
from jax import lax
from jax.experimental import pallas as pl
from jax.experimental.pallas import tpu as pltpu


def _round_up(x, m):
    return ((x + m - 1) // m) * m


# ---------------- kernels ----------------
# proj_sc caches the (TB, D_t) projected audio for the current batch tile
# (written at class-step j == 0, reused for every class tile); the per-step
# work is a single bf16 MXU pass proj @ E_tile^T giving a lane-dense (TB, TN)
# output block.

def _scores_from_proj(proj_sc, e_ref, o_ref):
    o_ref[...] = lax.dot_general(
        proj_sc[...].astype(e_ref.dtype), e_ref[...],
        dimension_numbers=(((1,), (1,)), ((), ())),   # proj @ E^T
        preferred_element_type=jnp.float32).astype(o_ref.dtype)


def _linear_bilinear_kernel(x_ref, w_ref, e_ref, o_ref, proj_sc):
    @pl.when(pl.program_id(1) == 0)
    def _():
        proj_sc[...] = jnp.dot(x_ref[...], w_ref[...],
                               preferred_element_type=jnp.float32)
    _scores_from_proj(proj_sc, e_ref, o_ref)


def _nonlinear_bilinear_kernel(x_ref, u_ref, v_ref, e_ref, o_ref, proj_sc):
    @pl.when(pl.program_id(1) == 0)
    def _():
        h = jnp.tanh(jnp.dot(x_ref[...], u_ref[...],
                             preferred_element_type=jnp.float32))
        proj_sc[...] = jnp.dot(h.astype(x_ref.dtype), v_ref[...],
                               preferred_element_type=jnp.float32)
    _scores_from_proj(proj_sc, e_ref, o_ref)


def _mlp_bilinear_kernel(x_ref, w1_ref, b1_ref, w2_ref, b2_ref, e_ref, o_ref,
                         proj_sc):
    @pl.when(pl.program_id(1) == 0)
    def _():
        h1 = jnp.dot(x_ref[...], w1_ref[...],
                     preferred_element_type=jnp.float32) + b1_ref[...]
        proj_sc[...] = jnp.dot(h1.astype(x_ref.dtype), w2_ref[...],
                               preferred_element_type=jnp.float32) + b2_ref[...]
    _scores_from_proj(proj_sc, e_ref, o_ref)


# ---------------- wrapper ----------------

def pretrain_vector_bilinear_forward(audio_embeds, targets, params, text_embeds,
                                     use_MLP=False, latent_dim=None,
                                     compute_dtype=jnp.bfloat16,
                                     max_batch_tile=128, max_class_tile=512):
    """Mirrors PretrainVectorBilinearModel.forward (all three branches)."""
    B, D_a = audio_embeds.shape
    T, D_t = text_embeds.shape

    TB = min(max_batch_tile, _round_up(B, 8))      # sublane-aligned batch tile
    Bp = _round_up(B, TB)
    TN = min(max_class_tile, _round_up(T, 128))    # lane-dense class tile
    Tp = _round_up(T, TN)

    x = audio_embeds.astype(compute_dtype)
    e = text_embeds.astype(compute_dtype)          # kept (T, D_t): no HBM transpose
    if Bp != B:
        x = jnp.pad(x, ((0, Bp - B), (0, 0)))
    if Tp != T:
        e = jnp.pad(e, ((0, Tp - T), (0, 0)))

    grid = (Bp // TB, Tp // TN)
    x_spec = pl.BlockSpec((TB, D_a), lambda i, j: (i, 0))
    e_spec = pl.BlockSpec((TN, D_t), lambda i, j: (j, 0))
    out_spec = pl.BlockSpec((TB, TN), lambda i, j: (i, j))
    out_shape = jax.ShapeDtypeStruct((Bp, Tp), jnp.float32)
    scratch = [pltpu.VMEM((TB, D_t), jnp.float32)]   # f32 cache of the projection
    # Batch axis independent -> parallel (v7x megacore); class axis carries the
    # cached projection in scratch -> arbitrary (sequential).
    cp = pltpu.CompilerParams(dimension_semantics=("parallel", "arbitrary"))

    def full_spec(shape):
        n = len(shape)
        return pl.BlockSpec(shape, lambda i, j: (0,) * n)

    itm = jnp.dtype(compute_dtype).itemsize
    base_bytes = (Bp * D_a + (Bp // TB) * Tp * D_t) * itm + Bp * Tp * 4

    if latent_dim is None:
        if use_MLP:
            w1 = params["w1"].astype(compute_dtype)
            w2 = params["w2"].astype(compute_dtype)
            b1 = params["b1"].astype(jnp.float32)
            b2 = params["b2"].astype(jnp.float32)
            mid = w1.shape[1]
            cost = pl.CostEstimate(
                flops=2 * Bp * (D_a * mid + mid * D_t + D_t * Tp),
                transcendentals=0,
                bytes_accessed=base_bytes + (w1.size + w2.size) * itm
                + (b1.size + b2.size) * 4)
            scores = pl.pallas_call(
                _mlp_bilinear_kernel,
                out_shape=out_shape, grid=grid,
                in_specs=[x_spec, full_spec(w1.shape), full_spec(b1.shape),
                          full_spec(w2.shape), full_spec(b2.shape), e_spec],
                out_specs=out_spec, scratch_shapes=scratch,
                compiler_params=cp, cost_estimate=cost,
            )(x, w1, b1, w2, b2, e)
            return {"score": scores[:B, :T], "target": targets}
        else:
            W = params["W"].astype(compute_dtype)
            cost = pl.CostEstimate(
                flops=2 * Bp * (D_a * D_t + D_t * Tp),
                transcendentals=0,
                bytes_accessed=base_bytes + W.size * itm)
            scores = pl.pallas_call(
                _linear_bilinear_kernel,
                out_shape=out_shape, grid=grid,
                in_specs=[x_spec, full_spec(W.shape), e_spec],
                out_specs=out_spec, scratch_shapes=scratch,
                compiler_params=cp, cost_estimate=cost,
            )(x, W, e)
            return {"W": params["W"], "score": scores[:B, :T],
                    "target": targets}
    else:
        U = params["U"].astype(compute_dtype)
        V = params["V"].astype(compute_dtype)
        L = U.shape[1]
        cost = pl.CostEstimate(
            flops=2 * Bp * (D_a * L + L * D_t + D_t * Tp),
            transcendentals=Bp * L,
            bytes_accessed=base_bytes + (U.size + V.size) * itm)
        scores = pl.pallas_call(
            _nonlinear_bilinear_kernel,
            out_shape=out_shape, grid=grid,
            in_specs=[x_spec, full_spec(U.shape), full_spec(V.shape), e_spec],
            out_specs=out_spec, scratch_shapes=scratch,
            compiler_params=cp, cost_estimate=cost,
        )(x, U, V, e)
        return {"W": [params["U"], params["V"]], "score": scores[:B, :T],
                "target": targets}


# ---------------- main ----------------

if __name__ == "__main__":
    key = jax.random.PRNGKey(0)
    ks = jax.random.split(key, 10)

    B, D_AUDIO, D_TEXT, T_CLASSES, LATENT = 16, 256, 128, 128, 32

    audio = jax.random.normal(ks[0], (B, D_AUDIO), jnp.float32)
    text_embeds = jax.random.normal(ks[1], (T_CLASSES, D_TEXT), jnp.float32)
    targets = jax.random.randint(ks[2], (B,), 0, T_CLASSES, jnp.int32)

    # --- parameter init (shapes as in the module __init__) ---
    W = jax.random.normal(ks[3], (D_AUDIO, D_TEXT), jnp.float32) * 0.01
    U = jax.random.normal(ks[4], (D_AUDIO, LATENT), jnp.float32) * 0.01
    V = jax.random.normal(ks[5], (LATENT, D_TEXT), jnp.float32) * 0.01
    mid = D_AUDIO // 2 if D_AUDIO >= 2 * D_TEXT else D_TEXT
    w1 = jax.random.normal(ks[6], (D_AUDIO, mid), jnp.float32) * 0.02
    b1 = jax.random.normal(ks[7], (1, mid), jnp.float32) * 0.02
    w2 = jax.random.normal(ks[8], (mid, D_TEXT), jnp.float32) * 0.02
    b2 = jax.random.normal(ks[9], (1, D_TEXT), jnp.float32) * 0.02

    # bf16-roundtripped operands for the references (kernels compute with bf16
    # operands and f32 accumulation).
    r = lambda a: a.astype(jnp.bfloat16).astype(jnp.float32)

    # --- linear branch (default: use_MLP=False, latent_dim=None) ---
    out_lin = pretrain_vector_bilinear_forward(audio, targets, {"W": W},
                                               text_embeds)
    jax.block_until_ready(out_lin["score"])
    ref_lin = r(audio) @ r(W) @ r(text_embeds).T
    assert out_lin["score"].shape == (B, T_CLASSES)
    assert jnp.allclose(out_lin["score"], ref_lin, atol=2e-2, rtol=2e-2)

    # --- nonlinear branch (latent_dim=LATENT) ---
    out_nl = pretrain_vector_bilinear_forward(audio, targets,
                                              {"U": U, "V": V},
                                              text_embeds, latent_dim=LATENT)
    jax.block_until_ready(out_nl["score"])
    ref_nl = jnp.tanh(r(audio) @ r(U)) @ r(V) @ r(text_embeds).T
    assert jnp.allclose(out_nl["score"], ref_nl, atol=2e-2, rtol=2e-2)

    # --- MLP branch (use_MLP=True) ---
    out_mlp = pretrain_vector_bilinear_forward(
        audio, targets, {"w1": w1, "b1": b1, "w2": w2, "b2": b2},
        text_embeds, use_MLP=True)
    jax.block_until_ready(out_mlp["score"])
    ref_mlp = ((r(audio) @ r(w1) + b1) @ r(w2) + b2) @ r(text_embeds).T
    assert jnp.allclose(out_mlp["score"], ref_mlp, atol=2e-2, rtol=2e-2)

    print("KERNEL_OK")
</pallas_src>

<mosaic_0001>
module attributes {stable_mosaic.version = 11 : i64} {
  func.func @_linear_bilinear_kernel(%arg0: i32, %arg1: i32, %arg2: memref<16x256xbf16, #tpu.memory_space<vmem>>, %arg3: memref<256x128xbf16, #tpu.memory_space<vmem>>, %arg4: memref<128x128xbf16, #tpu.memory_space<vmem>>, %arg5: memref<16x128xf32, #tpu.memory_space<vmem>>, %arg6: memref<16x128xf32, #tpu.memory_space<vmem>>) attributes {dimension_semantics = [#tpu.dimension_semantics<parallel>, #tpu.dimension_semantics<arbitrary>], iteration_bounds = array<i64: 1, 1>, scalar_prefetch = 0 : i64, scratch_operands = 1 : i64, tpu.core_type = #tpu.core_type<tc>, window_params = [{transform_indices = @transform_0, window_bounds = array<i64: 16, 256>}, {pipeline_mode = #tpu.pipeline_mode<synchronous>, transform_indices = @transform_1, window_bounds = array<i64: 256, 128>}, {transform_indices = @transform_2, window_bounds = array<i64: 128, 128>}, {transform_indices = @transform_3, window_bounds = array<i64: 16, 128>}]} {
    %c0_i32 = arith.constant 0 : i32
    %0 = arith.cmpi eq, %arg1, %c0_i32 : i32
    %1 = arith.extui %0 : i1 to i32
    %c0_i32_0 = arith.constant 0 : i32
    %2 = arith.cmpi ne, %1, %c0_i32_0 : i32
    scf.if %2 {
      %c0_6 = arith.constant 0 : index
      %c0_7 = arith.constant 0 : index
      %8 = vector.load %arg2[%c0_6, %c0_7] : memref<16x256xbf16, #tpu.memory_space<vmem>>, vector<16x256xbf16>
      %c0_8 = arith.constant 0 : index
      %c0_9 = arith.constant 0 : index
      %9 = vector.load %arg3[%c0_8, %c0_9] : memref<256x128xbf16, #tpu.memory_space<vmem>>, vector<256x128xbf16>
      %cst_10 = arith.constant dense<0.000000e+00> : vector<16x128xf32>
      %10 = tpu.matmul %8, %9, %cst_10 {dimension_numbers = #tpu.dot_dimension_numbers<[1], [0], [0], [1], [0, 0, 1, 1], [], []>} : vector<16x256xbf16>, vector<256x128xbf16>, vector<16x128xf32> -> vector<16x128xf32>
      %c0_11 = arith.constant 0 : index
      %c0_12 = arith.constant 0 : index
      %11 = vector.load %arg6[%c0_11, %c0_12] : memref<16x128xf32, #tpu.memory_space<vmem>>, vector<16x128xf32>
      tpu.vector_store %arg6[%c0_11, %c0_12], %10 {strides = array<i32>} : memref<16x128xf32, #tpu.memory_space<vmem>>, vector<16x128xf32>,
    } else {
    }
    %c0 = arith.constant 0 : index
    %c0_1 = arith.constant 0 : index
    %3 = vector.load %arg6[%c0, %c0_1] : memref<16x128xf32, #tpu.memory_space<vmem>>, vector<16x128xf32>
    %4 = arith.truncf %3 : vector<16x128xf32> to vector<16x128xbf16>
    %c0_2 = arith.constant 0 : index
    %c0_3 = arith.constant 0 : index
    %5 = vector.load %arg4[%c0_2, %c0_3] : memref<128x128xbf16, #tpu.memory_space<vmem>>, vector<128x128xbf16>
    %cst = arith.constant dense<0.000000e+00> : vector<16x128xf32>
    %6 = tpu.matmul %4, %5, %cst {dimension_numbers = #tpu.dot_dimension_numbers<[1], [1], [0], [0], [0, 0, 1, 0], [], []>} : vector<16x128xbf16>, vector<128x128xbf16>, vector<16x128xf32> -> vector<16x128xf32>
    %c0_4 = arith.constant 0 : index
    %c0_5 = arith.constant 0 : index
    %7 = vector.load %arg5[%c0_4, %c0_5] : memref<16x128xf32, #tpu.memory_space<vmem>>, vector<16x128xf32>
    tpu.vector_store %arg5[%c0_4, %c0_5], %6 {strides = array<i32>} : memref<16x128xf32, #tpu.memory_space<vmem>>, vector<16x128xf32>,
    return
  }
  func.func @transform_0(%arg0: i32, %arg1: i32) -> (i32, i32) {
    %c0_i32 = arith.constant 0 : i32
    %c0_i32_0 = arith.constant 0 : i32
    return %arg0, %c0_i32 : i32, i32
  }
  func.func @transform_1(%arg0: i32, %arg1: i32) -> (i32, i32) {
    %c0_i32 = arith.constant 0 : i32
    %c0_i32_0 = arith.constant 0 : i32
    %c0_i32_1 = arith.constant 0 : i32
    return %c0_i32, %c0_i32_0 : i32, i32
  }
  func.func @transform_2(%arg0: i32, %arg1: i32) -> (i32, i32) {
    %c0_i32 = arith.constant 0 : i32
    %c0_i32_0 = arith.constant 0 : i32
    return %arg1, %c0_i32 : i32, i32
  }
  func.func @transform_3(%arg0: i32, %arg1: i32) -> (i32, i32) {
    %c0_i32 = arith.constant 0 : i32
    return %arg0, %arg1 : i32, i32
  }
}

</mosaic_0001>

<llo_original>
// kernel: tpu_custom_call.1
$region0: #{tpu_custom_call.1}
  #allocation0 [shape = 'u32[]', space=smem, size = 0x4, offset = 0x4, fixed_abs, tag = 'smem constant byte address 0x4 - core index']
  #allocation1 [shape = 'u32[72,128]{1,0:T(1,128)}', space=vmem, size = 0x9000, scoped, tag = 'internal scratch']
  #allocation2 [shape = 'f32[16,128]{1,0:T(8,128)}', space=vmem, size = 0x2000, scoped, tag = 'scratch operand']
  %s0 = inlined_call_operand.hbm [shape: bf16[16,256], index: 0, kind: input, shape index: {}]
  %s1 = inlined_call_operand.hbm [shape: bf16[256,128], index: 1, kind: input, shape index: {}]
  %s2 = inlined_call_operand.hbm [shape: bf16[128,128], index: 2, kind: input, shape index: {}]
  %s3 = inlined_call_operand.hbm [shape: f32[16,128], index: 3, kind: output, shape index: {}]
  %s4 = sld [smem:[#allocation0]]
  $region38: #{tpu_custom_call.1} parent=0
    _
  %s6 = ssub.s32 1, %s4
  %s7 = scalar_select 0, %s6, %s4
  $region1: #{tpu_custom_call.1} parent=0
    #allocation3 [shape = 'u8[8192]{0}', space=vmem, size = 0x2000, scoped, tag = 'input window, operand 0, single buffered']
    #allocation4 [shape = 's32[1]{0}', space=sflag, size = 0x4, scoped, tag = 'scoped memory for tpu_custom_call.1']
    #allocation5 [shape = 's32[1]{0}', space=sflag, size = 0x4, scoped, tag = 'scoped memory for tpu_custom_call.1']
    #allocation6 [shape = 'u8[65536]{0}', space=vmem, size = 0x10000, scoped, tag = 'input window, operand 1, single buffered']
    #allocation7 [shape = 's32[1]{0}', space=sflag, size = 0x4, scoped, tag = 'scoped memory for tpu_custom_call.1']
    #allocation8 [shape = 'u8[32768]{0}', space=vmem, size = 0x8000, scoped, tag = 'input window, operand 2, single buffered']
    #allocation9 [shape = 'u8[8192]{0}', space=vmem, size = 0x2000, scoped, tag = 'output window, operand 0, single buffered']
    %8 = vsyncpa [#allocation4], 0
    %9 = vsyncpa [#allocation7], 0
    %10 = vsyncpa [#allocation5], 0
    // Predicated region
    $region2: #{tpu_custom_call.1} parent=1 // pred_check
      _
    $region3: #{tpu_custom_call.1} parent=1 // pred_check_branch
      %12 = sbr.rel (0) target = $region5
    $region4: #{tpu_custom_call.1} parent=1 // pred_region
      %14 = vsyncadd [#allocation4], 0
      %s15 = sshll.u32 %s0, 4
      %s16 = int_to_ptr.hbm [resolvable:$true] %s15
      %s17 = sshll.u32 [#allocation3], 4
      %s18 = int_to_ptr.vmem [resolvable:$true] %s17
      %23 = dma.hbm_to_vmem [thread:$0]  %s16, 256, %s18, [#allocation4], 128, 128, 8
    $region5: #{tpu_custom_call.1} parent=1 // pred_fallthru
      _
    // Predicated region
    $region6: #{tpu_custom_call.1} parent=1 // pred_check
      _
    $region7: #{tpu_custom_call.1} parent=1 // pred_check_branch
      %25 = sbr.rel (0) target = $region9
    $region8: #{tpu_custom_call.1} parent=1 // pred_region
      %27 = vsyncadd [#allocation7], 0
      %s28 = sshll.u32 %s1, 4
      %s29 = int_to_ptr.hbm [resolvable:$true] %s28
      %s30 = sshll.u32 [#allocation6], 4
      %s31 = int_to_ptr.vmem [resolvable:$true] %s30
      %36 = dma.hbm_to_vmem [thread:$0]  %s29, 2048, %s31, [#allocation7], 64, 64, 4
    $region9: #{tpu_custom_call.1} parent=1 // pred_fallthru
      _
    // Predicated region
    $region10: #{tpu_custom_call.1} parent=1 // pred_check
      _
    $region11: #{tpu_custom_call.1} parent=1 // pred_check_branch
      %38 = sbr.rel (0) target = $region13
    $region12: #{tpu_custom_call.1} parent=1 // pred_region
      %40 = vsyncadd [#allocation7], 0
      %s41 = sshll.u32 %s2, 4
      %s42 = int_to_ptr.hbm [resolvable:$true] %s41
      %s43 = sshll.u32 [#allocation8], 4
      %s44 = int_to_ptr.vmem [resolvable:$true] %s43
      %49 = dma.hbm_to_vmem [thread:$0]  %s42, 1024, %s44, [#allocation7], 64, 64, 4
    $region13: #{tpu_custom_call.1} parent=1 // pred_fallthru
      _
    // Predicated region
    $region14: #{tpu_custom_call.1} parent=1 // pred_check
      _
    $region15: #{tpu_custom_call.1} parent=1 // pred_check_branch
      %51 = sbr.rel (0) target = $region17
    $region16: #{tpu_custom_call.1} parent=1 // pred_region
      %53 = dma.done [#allocation4], 256
    $region17: #{tpu_custom_call.1} parent=1 // pred_fallthru
      _
    // Predicated region
    $region18: #{tpu_custom_call.1} parent=1 // pred_check
      _
    $region19: #{tpu_custom_call.1} parent=1 // pred_check_branch
      %55 = sbr.rel (0) target = $region21
    $region20: #{tpu_custom_call.1} parent=1 // pred_region
      %57 = dma.done [#allocation7], 2048
    $region21: #{tpu_custom_call.1} parent=1 // pred_fallthru
      _
    // Predicated region
    $region22: #{tpu_custom_call.1} parent=1 // pred_check
      _
    $region23: #{tpu_custom_call.1} parent=1 // pred_check_branch
      %59 = sbr.rel (0) target = $region25
    $region24: #{tpu_custom_call.1} parent=1 // pred_region
      %61 = dma.done [#allocation7], 1024
    $region25: #{tpu_custom_call.1} parent=1 // pred_fallthru
      _
    %p62 = scmp.eq.s32.totalorder 0, 0
    // Predicated region
    $region26: #{tpu_custom_call.1} parent=1 // pred_check
      %p63 = pneg %p62
    $region27: #{tpu_custom_call.1} parent=1 // pred_check_branch
      %65 = sbr.rel (%p63) target = $region29
    $region28: #{tpu_custom_call.1} parent=1 // pred_region
      %v66 = vld [vmem:[#allocation3] sm:$0xff]
      %v67 = vld [vmem:[#allocation3 + $0x8] sm:$0xff]
      %v68 = vld [vmem:[#allocation6] sm:$0xf]
      %v69 = vld [vmem:[#allocation6 + $0x4] sm:$0xf]
      %v70 = vld [vmem:[#allocation6 + $0x8] sm:$0xf]
      %v71 = vld [vmem:[#allocation6 + $0xc] sm:$0xf]
      %v72 = vld [vmem:[#allocation6 + $0x10] sm:$0xf]
      %v73 = vld [vmem:[#allocation6 + $0x14] sm:$0xf]
      %v74 = vld [vmem:[#allocation6 + $0x18] sm:$0xf]
      %v75 = vld [vmem:[#allocation6 + $0x1c] sm:$0xf]
      %v76 = vld [vmem:[#allocation6 + $0x20] sm:$0xf]
      %v77 = vld [vmem:[#allocation6 + $0x24] sm:$0xf]
      %v78 = vld [vmem:[#allocation6 + $0x28] sm:$0xf]
      %v79 = vld [vmem:[#allocation6 + $0x2c] sm:$0xf]
      %v80 = vld [vmem:[#allocation6 + $0x30] sm:$0xf]
      %v81 = vld [vmem:[#allocation6 + $0x34] sm:$0xf]
      %v82 = vld [vmem:[#allocation6 + $0x38] sm:$0xf]
      %v83 = vld [vmem:[#allocation6 + $0x3c] sm:$0xf]
      %v84 = vld [vmem:[#allocation6 + $0x40] sm:$0xf]
      %v85 = vld [vmem:[#allocation6 + $0x44] sm:$0xf]
      %v86 = vld [vmem:[#allocation6 + $0x48] sm:$0xf]
      %v87 = vld [vmem:[#allocation6 + $0x4c] sm:$0xf]
      %v88 = vld [vmem:[#allocation6 + $0x50] sm:$0xf]
      %v89 = vld [vmem:[#allocation6 + $0x54] sm:$0xf]
      %v90 = vld [vmem:[#allocation6 + $0x58] sm:$0xf]
      %v91 = vld [vmem:[#allocation6 + $0x5c] sm:$0xf]
      %v92 = vld [vmem:[#allocation6 + $0x60] sm:$0xf]
      %v93 = vld [vmem:[#allocation6 + $0x64] sm:$0xf]
      %v94 = vld [vmem:[#allocation6 + $0x68] sm:$0xf]
      %v95 = vld [vmem:[#allocation6 + $0x6c] sm:$0xf]
      %v96 = vld [vmem:[#allocation6 + $0x70] sm:$0xf]
      %v97 = vld [vmem:[#allocation6 + $0x74] sm:$0xf]
      %v98 = vld [vmem:[#allocation6 + $0x78] sm:$0xf]
      %v99 = vld [vmem:[#allocation6 + $0x7c] sm:$0xf]
      %v102 = vunpack.c.l.b16 %v66
      %v103 = vunpack.c.h.b16 %v66
      %v104 = vunpack.c.l.b16 %v67
      %v105 = vunpack.c.h.b16 %v67
      %v106 = vpack.c.b16 %v104, %v102
      %v107 = vpack.c.b16 %v105, %v103
      %v142 = vunpack.c.l.b16 %v68
      %v143 = vunpack.c.l.b16 %v69
      %v144 = vunpack.c.l.b16 %v70
      %v145 = vunpack.c.l.b16 %v71
      %v146 = vunpack.c.l.b16 %v72
      %v147 = vunpack.c.l.b16 %v73
      %v148 = vunpack.c.l.b16 %v74
      %v149 = vunpack.c.l.b16 %v75
      %v150 = vunpack.c.l.b16 %v76
      %v151 = vunpack.c.l.b16 %v77
      %v152 = vunpack.c.l.b16 %v78
      %v153 = vunpack.c.l.b16 %v79
      %v154 = vunpack.c.l.b16 %v80
      %v155 = vunpack.c.l.b16 %v81
      %v156 = vunpack.c.l.b16 %v82
      %v157 = vunpack.c.l.b16 %v83
      %v158 = vunpack.c.l.b16 %v84
      %v159 = vunpack.c.l.b16 %v85
      %v160 = vunpack.c.l.b16 %v86
      %v161 = vunpack.c.l.b16 %v87
      %v162 = vunpack.c.l.b16 %v88
      %v163 = vunpack.c.l.b16 %v89
      %v164 = vunpack.c.l.b16 %v90
      %v165 = vunpack.c.l.b16 %v91
      %v166 = vunpack.c.l.b16 %v92
      %v167 = vunpack.c.l.b16 %v93
      %v168 = vunpack.c.l.b16 %v94
      %v169 = vunpack.c.l.b16 %v95
      %v170 = vunpack.c.l.b16 %v96
      %v171 = vunpack.c.l.b16 %v97
      %v172 = vunpack.c.l.b16 %v98
      %v173 = vunpack.c.l.b16 %v99
      %v174 = vpack.c.b16 %v143, %v142
      %v175 = vpack.c.b16 %v145, %v144
      %v176 = vpack.c.b16 %v147, %v146
      %v177 = vpack.c.b16 %v149, %v148
      %v178 = vpack.c.b16 %v151, %v150
      %v179 = vpack.c.b16 %v153, %v152
      %v180 = vpack.c.b16 %v155, %v154
      %v181 = vpack.c.b16 %v157, %v156
      %v182 = vpack.c.b16 %v159, %v158
      %v183 = vpack.c.b16 %v161, %v160
      %v184 = vpack.c.b16 %v163, %v162
      %v185 = vpack.c.b16 %v165, %v164
      %v186 = vpack.c.b16 %v167, %v166
      %v187 = vpack.c.b16 %v169, %v168
      %v188 = vpack.c.b16 %v171, %v170
      %v189 = vpack.c.b16 %v173, %v172
      %206 = vmatpush.bf16.msra.mxu0 %v181
      %207 = vmatpush.bf16.msra.mxu0 %v180
      %208 = vmatpush.bf16.msra.mxu0 %v179
      %209 = vmatpush.bf16.msra.mxu0 %v178
      %210 = vmatpush.bf16.msra.mxu0 %v177
      %211 = vmatpush.bf16.msra.mxu0 %v176
      %212 = vmatpush.bf16.msra.mxu0 %v175
      %213 = vmatpush.bf16.msra.mxu0 %v174
      %214 = vmatmul.bf16.gmra.mxu0 %v106
      %v215 = vpop.f32.mrf.mxu0
      %v216 = vadd.f32 0.0, %v215
      %v217 = vpop.f32.mrf.mxu0
      %v218 = vadd.f32 0.0, %v217
      %219 = vdwg.mxu0
      %220 = vmatpush.bf16.msra.mxu0 %v189
      %221 = vmatpush.bf16.msra.mxu0 %v188
      %222 = vmatpush.bf16.msra.mxu0 %v187
      %223 = vmatpush.bf16.msra.mxu0 %v186
      %224 = vmatpush.bf16.msra.mxu0 %v185
      %225 = vmatpush.bf16.msra.mxu0 %v184
      %226 = vmatpush.bf16.msra.mxu0 %v183
      %227 = vmatpush.bf16.msra.mxu0 %v182
      %228 = vmatmul.bf16.gmra.mxu0 %v107
      %v229 = vpop.f32.mrf.mxu0
      %v230 = vadd.f32 %v216, %v229
      %v231 = vpop.f32.mrf.mxu0
      %v232 = vadd.f32 %v218, %v231
      %233 = vdwg.mxu0
      %234 = vst [vmem:[#allocation2] sm:$0xff] %v230
      %235 = vst [vmem:[#allocation2 + $0x8] sm:$0xff] %v232
    $region29: #{tpu_custom_call.1} parent=1 // pred_fallthru
      _
    %v236 = vld [vmem:[#allocation2] sm:$0xff]
    %v237 = vld [vmem:[#allocation2 + $0x8] sm:$0xff]
    %v238 = vpack.c.bf16 %v237, %v236
    %v239 = vld [vmem:[#allocation8] sm:$0xf]
    %v240 = vld [vmem:[#allocation8 + $0x4] sm:$0xf]
    %v241 = vld [vmem:[#allocation8 + $0x8] sm:$0xf]
    %v242 = vld [vmem:[#allocation8 + $0xc] sm:$0xf]
    %v243 = vld [vmem:[#allocation8 + $0x10] sm:$0xf]
    %v244 = vld [vmem:[#allocation8 + $0x14] sm:$0xf]
    %v245 = vld [vmem:[#allocation8 + $0x18] sm:$0xf]
    %v246 = vld [vmem:[#allocation8 + $0x1c] sm:$0xf]
    %v247 = vld [vmem:[#allocation8 + $0x20] sm:$0xf]
    %v248 = vld [vmem:[#allocation8 + $0x24] sm:$0xf]
    %v249 = vld [vmem:[#allocation8 + $0x28] sm:$0xf]
    %v250 = vld [vmem:[#allocation8 + $0x2c] sm:$0xf]
    %v251 = vld [vmem:[#allocation8 + $0x30] sm:$0xf]
    %v252 = vld [vmem:[#allocation8 + $0x34] sm:$0xf]
    %v253 = vld [vmem:[#allocation8 + $0x38] sm:$0xf]
    %v254 = vld [vmem:[#allocation8 + $0x3c] sm:$0xf]
    %v271 = vunpack.c.l.b16 %v239
    %v272 = vunpack.c.l.b16 %v240
    %v273 = vunpack.c.l.b16 %v241
    %v274 = vunpack.c.l.b16 %v242
    %v275 = vunpack.c.l.b16 %v243
    %v276 = vunpack.c.l.b16 %v244
    %v277 = vunpack.c.l.b16 %v245
    %v278 = vunpack.c.l.b16 %v246
    %v279 = vunpack.c.l.b16 %v247
    %v280 = vunpack.c.l.b16 %v248
    %v281 = vunpack.c.l.b16 %v249
    %v282 = vunpack.c.l.b16 %v250
    %v283 = vunpack.c.l.b16 %v251
    %v284 = vunpack.c.l.b16 %v252
    %v285 = vunpack.c.l.b16 %v253
    %v286 = vunpack.c.l.b16 %v254
    %v287 = vpack.c.b16 %v272, %v271
    %v288 = vpack.c.b16 %v274, %v273
    %v289 = vpack.c.b16 %v276, %v275
    %v290 = vpack.c.b16 %v278, %v277
    %v291 = vpack.c.b16 %v280, %v279
    %v292 = vpack.c.b16 %v282, %v281
    %v293 = vpack.c.b16 %v284, %v283
    %v294 = vpack.c.b16 %v286, %v285
    %303 = vmatpush.bf16.xpose.msra.mxu0 %v294
    %304 = vmatpush.bf16.xpose.msra.mxu0 %v293
    %305 = vmatpush.bf16.xpose.msra.mxu0 %v292
    %306 = vmatpush.bf16.xpose.msra.mxu0 %v291
    %307 = vmatpush.bf16.xpose.msra.mxu0 %v290
    %308 = vmatpush.bf16.xpose.msra.mxu0 %v289
    %309 = vmatpush.bf16.xpose.msra.mxu0 %v288
    %310 = vmatpush.bf16.xpose.msra.mxu0 %v287
    %311 = vmatmul.bf16.gmra.mxu0 %v238
    %v312 = vpop.f32.mrf.mxu0
    %v313 = vadd.f32 0.0, %v312
    %v314 = vpop.f32.mrf.mxu0
    %v315 = vadd.f32 0.0, %v314
    %316 = vdwg.mxu0
    %317 = vst [vmem:[#allocation9] sm:$0xff] %v313
    %318 = vst [vmem:[#allocation9 + $0x8] sm:$0xff] %v315
    // Predicated region
    $region30: #{tpu_custom_call.1} parent=1 // pred_check
      _
    $region31: #{tpu_custom_call.1} parent=1 // pred_check_branch
      %320 = sbr.rel (0) target = $region33
    $region32: #{tpu_custom_call.1} parent=1 // pred_region
      %322 = vsyncadd [#allocation5], 0
      %s323 = sshll.u32 [#allocation9], 4
      %s324 = int_to_ptr.vmem [resolvable:$true] %s323
      %s325 = sshll.u32 %s3, 4
      %s326 = int_to_ptr.hbm [resolvable:$true] %s325
      %331 = dma.vmem_to_hbm [thread:$0]  %s324, 256, %s326, [#allocation5], 128, 128, 8
    $region33: #{tpu_custom_call.1} parent=1 // pred_fallthru
      _
    // Predicated region
    $region34: #{tpu_custom_call.1} parent=1 // pred_check
      _
    $region35: #{tpu_custom_call.1} parent=1 // pred_check_branch
      %333 = sbr.rel (0) target = $region37
    $region36: #{tpu_custom_call.1} parent=1 // pred_region
      %335 = dma.done [#allocation5], 256
    $region37: #{tpu_custom_call.1} parent=1 // pred_fallthru
      _
    %336 = vsyncpa [#allocation4], 1
    %337 = vsyncpa [#allocation7], 1
    %338 = vsyncpa [#allocation5], 1

</llo_original>
